<compile_context>
chip_gen: v5e
topology: v5e:2x2
jax: 0.10.0
libtpu: 0.0.40
codegen_flags: <defaults>
</compile_context>

<pallas_src>
import jax
import jax.numpy as jnp
from jax.experimental import pallas as pl
from jax.experimental.pallas import tpu as pltpu


def _round_up(a: int, b: int) -> int:
    return ((a + b - 1) // b) * b


def _vmem_capacity_bytes() -> int:
    """Physical VMEM of the attached TPU; conservative fallback if unknown."""
    try:
        return int(pltpu.get_tpu_info().vmem_capacity_bytes)
    except Exception:
        return 64 << 20  # assume the smallest (v7x per-TC) if query fails


def _select_tiles(M: int, D: int, V: int, out_bytes: int, vmem_limit: int):
    """Pick (tm, tn) that fit the scoped-VMEM budget with headroom."""
    # Vocab tile: multiple of 128 for lane-dense stores, 512 preferred (MXU
    # output width on v6e/v7x).
    tn = min(512, _round_up(V, 128))

    # Row tile: multiple of 16 (bf16 packs 16 sublanes per vreg). Bigger tiles
    # on 128 MiB chips; keep >= 4 row-blocks when M allows so the parallel
    # axis still pipelines with >= 2 steps per TensorCore on v7x.
    tm_cap = 1024 if vmem_limit >= (72 << 20) else 512
    tm = min(tm_cap, _round_up(M, 16))
    if M > 64:
        tm = min(tm, max(16, _round_up(pl.cdiv(M, 4), 16)))
    tm = _round_up(tm, 16)

    def need(tm_, tn_):
        return (2 * tm_ * D * 2            # x tile, double-buffered, bf16
                + 2 * D * tn_ * 2          # W tile, double-buffered, bf16
                + 2 * 8 * tn_ * 4          # bias tile (sublane-padded), x2
                + 2 * tm_ * tn_ * out_bytes  # out tile, double-buffered
                + 3 * tm_ * tn_ * 4        # logits/shifted/exp f32 temps
                + 2 * tm_ * 128 * 4)       # (tm,1) scratch pads lanes to 128

    # Shrink until the estimate fits comfortably inside the scoped limit.
    while need(tm, tn) > (vmem_limit * 3) // 4 and (tm > 64 or tn > 128):
        if tm >= tn and tm > 64:
            tm = max(64, _round_up(tm // 2, 16))
        elif tn > 128:
            tn = max(128, _round_up(tn // 2, 128))
        else:
            break
    return tm, tn


def generator_kernel(x_ref, w_ref, b_ref, o_ref, m_sc, l_sc):
    p = pl.program_id(1)   # phase: 0 = logsumexp stats, 1 = write log-probs
    j = pl.program_id(2)   # vocab tile

    @pl.when(jnp.logical_and(p == 0, j == 0))
    def _init():
        m_sc[...] = jnp.full_like(m_sc, -jnp.inf)
        l_sc[...] = jnp.zeros_like(l_sc)

    # (tm, D) x (D, tn) on the MXU: bf16 inputs, f32 accumulation.
    logits = jnp.dot(x_ref[...], w_ref[...],
                     preferred_element_type=jnp.float32) + b_ref[...]

    @pl.when(p == 0)
    def _stats():
        # Online logsumexp update; exp stays inside the per-V-tile loop so it
        # overlaps the next tile's MXU work instead of forming an epilogue.
        m_prev = m_sc[...]
        m_new = jnp.maximum(m_prev, jnp.max(logits, axis=-1, keepdims=True))
        l_sc[...] = (l_sc[...] * jnp.exp(m_prev - m_new)
                     + jnp.sum(jnp.exp(logits - m_new), axis=-1, keepdims=True))
        m_sc[...] = m_new

    @pl.when(p == 1)
    def _write():
        lse = m_sc[...] + jnp.log(l_sc[...])
        o_ref[...] = (logits - lse).astype(o_ref.dtype)


def generator_forward(x, w, b, *, out_dtype=jnp.float32):
    """x: (B, S, D); w: (D, V); b: (V,) -> (B, S, V) log-probs."""
    B, S, D = x.shape
    V = w.shape[1]
    M = B * S
    out_bytes = jnp.dtype(out_dtype).itemsize

    # Generation-aware scoped-VMEM budget (~75% of physical).
    vmem_cap = _vmem_capacity_bytes()
    vmem_limit = max(32 << 20, int(vmem_cap * 3) // 4)

    tm, tn = _select_tiles(M, D, V, out_bytes, vmem_limit)

    M_pad = _round_up(M, tm)
    V_pad = _round_up(V, tn)
    grid_m = M_pad // tm
    grid_v = V_pad // tn

    # bf16 inputs: halve HBM traffic / VMEM residency, native MXU dtype.
    x2 = x.reshape(M, D).astype(jnp.bfloat16)
    if M_pad != M:
        x2 = jnp.pad(x2, ((0, M_pad - M), (0, 0)))
    w_bf = w.astype(jnp.bfloat16)
    if V_pad != V:
        w_bf = jnp.pad(w_bf, ((0, 0), (0, V_pad - V)))
    b2 = b.astype(jnp.float32).reshape(1, V)
    if V_pad != V:
        # Padded vocab columns get a hugely negative bias so exp() underflows
        # to zero and they do not perturb the logsumexp; sliced off below.
        b2 = jnp.pad(b2, ((0, 0), (0, V_pad - V)), constant_values=-1e30)

    cost = pl.CostEstimate(
        flops=2 * 2 * M_pad * D * V_pad,                # two matmul passes
        transcendentals=M_pad * V_pad + 4 * M_pad,
        bytes_accessed=(M_pad * D * 2
                        + 2 * grid_m * D * V_pad * 2    # W streamed twice/row-blk
                        + 2 * grid_m * V_pad * 4
                        + M_pad * V_pad * out_bytes),
    )

    out = pl.pallas_call(
        generator_kernel,
        out_shape=jax.ShapeDtypeStruct((M_pad, V_pad), out_dtype),
        grid_spec=pltpu.PrefetchScalarGridSpec(
            num_scalar_prefetch=0,
            grid=(grid_m, 2, grid_v),
            in_specs=[
                # x row tile: constant over (phase, vocab) -> fetched once / row blk
                pl.BlockSpec((tm, D), lambda i, p, j: (i, 0)),
                # W vocab tile (bf16), streamed along j
                pl.BlockSpec((D, tn), lambda i, p, j: (0, j)),
                # bias vocab tile (f32)
                pl.BlockSpec((1, tn), lambda i, p, j: (0, j)),
            ],
            # Phase 0 parks on block (i, 0) and never stores; phase 1 writes
            # every (i, j) tile exactly once (lane-dense, unmasked vst).
            out_specs=pl.BlockSpec((tm, tn), lambda i, p, j: (i, p * j)),
            scratch_shapes=[pltpu.VMEM((tm, 1), jnp.float32),   # running max
                            pltpu.VMEM((tm, 1), jnp.float32)],  # running sum
        ),
        compiler_params=pltpu.CompilerParams(
            dimension_semantics=("parallel", "arbitrary", "arbitrary"),
            vmem_limit_bytes=int(vmem_limit),
        ),
        cost_estimate=cost,
    )(x2, w_bf, b2)

    if M_pad != M or V_pad != V:
        out = out[:M, :V]
    return out.reshape(B, S, V)


if __name__ == "__main__":
    # Small shapes consistent with the module: d_model=32, vocab=128,
    # batch=2, seq=8.
    B, S, D, V = 2, 8, 32, 128

    key = jax.random.PRNGKey(0)
    kx, kw, kb = jax.random.split(key, 3)

    # Deterministic "parameters" for nn.Linear(d_model, vocab); weight stored
    # already transposed to (D, V) for x @ W.
    x = jax.random.normal(kx, (B, S, D), dtype=jnp.float32)
    w = jax.random.normal(kw, (D, V), dtype=jnp.float32) * (1.0 / jnp.sqrt(D))
    b = jax.random.normal(kb, (V,), dtype=jnp.float32) * 0.01

    y = generator_forward(x, w, b)
    y = jax.block_until_ready(y)
    assert y.shape == (B, S, V)

    # Reference 1: same bf16-input / f32-accumulation math as the kernel.
    logits_bf = jnp.dot(
        x.reshape(B * S, D).astype(jnp.bfloat16),
        w.astype(jnp.bfloat16),
        preferred_element_type=jnp.float32,
    ) + b
    ref_bf = jax.nn.log_softmax(logits_bf, axis=-1).reshape(B, S, V)
    assert jnp.allclose(y, ref_bf, atol=2e-3, rtol=2e-3)

    # Reference 2: full-f32 math (loose tolerance covers bf16 input rounding).
    ref_f32 = jax.nn.log_softmax(
        jnp.einsum("bsd,dv->bsv", x, w) + b, axis=-1)
    assert jnp.allclose(y, ref_f32, atol=5e-2, rtol=5e-2)

    print("KERNEL_OK")
</pallas_src>

<mosaic_0001>
module attributes {stable_mosaic.version = 11 : i64} {
  func.func @generator_kernel(%arg0: i32, %arg1: i32, %arg2: i32, %arg3: memref<16x32xbf16, #tpu.memory_space<vmem>>, %arg4: memref<32x128xbf16, #tpu.memory_space<vmem>>, %arg5: memref<1x128xf32, #tpu.memory_space<vmem>>, %arg6: memref<16x128xf32, #tpu.memory_space<vmem>>, %arg7: memref<16x1xf32, #tpu.memory_space<vmem>>, %arg8: memref<16x1xf32, #tpu.memory_space<vmem>>) attributes {dimension_semantics = [#tpu.dimension_semantics<parallel>, #tpu.dimension_semantics<arbitrary>, #tpu.dimension_semantics<arbitrary>], iteration_bounds = array<i64: 1, 2, 1>, scalar_prefetch = 0 : i64, scratch_operands = 2 : i64, tpu.core_type = #tpu.core_type<tc>, window_params = [{transform_indices = @transform_0, window_bounds = array<i64: 16, 32>}, {transform_indices = @transform_1, window_bounds = array<i64: 32, 128>}, {transform_indices = @transform_2, window_bounds = array<i64: 1, 128>}, {transform_indices = @transform_3, window_bounds = array<i64: 16, 128>}]} {
    %c0_i32 = arith.constant 0 : i32
    %0 = arith.cmpi eq, %arg1, %c0_i32 : i32
    %c0_i32_0 = arith.constant 0 : i32
    %1 = arith.cmpi eq, %arg2, %c0_i32_0 : i32
    %2 = arith.andi %0, %1 : i1
    %3 = arith.extui %2 : i1 to i32
    %c0_i32_1 = arith.constant 0 : i32
    %4 = arith.cmpi ne, %3, %c0_i32_1 : i32
    scf.if %4 {
      %cst_10 = arith.constant 0xFF800000 : f32
      %17 = vector.broadcast %cst_10 : f32 to vector<16x1xf32>
      %c0_11 = arith.constant 0 : index
      %c0_12 = arith.constant 0 : index
      %18 = vector.load %arg7[%c0_11, %c0_12] : memref<16x1xf32, #tpu.memory_space<vmem>>, vector<16x1xf32>
      tpu.vector_store %arg7[%c0_11, %c0_12], %17 {strides = array<i32>} : memref<16x1xf32, #tpu.memory_space<vmem>>, vector<16x1xf32>,
      %cst_13 = arith.constant 0.000000e+00 : f32
      %19 = vector.broadcast %cst_13 : f32 to vector<16x1xf32>
      %c0_14 = arith.constant 0 : index
      %c0_15 = arith.constant 0 : index
      %20 = vector.load %arg8[%c0_14, %c0_15] : memref<16x1xf32, #tpu.memory_space<vmem>>, vector<16x1xf32>
      tpu.vector_store %arg8[%c0_14, %c0_15], %19 {strides = array<i32>} : memref<16x1xf32, #tpu.memory_space<vmem>>, vector<16x1xf32>,
    } else {
    }
    %c0 = arith.constant 0 : index
    %c0_2 = arith.constant 0 : index
    %5 = vector.load %arg3[%c0, %c0_2] : memref<16x32xbf16, #tpu.memory_space<vmem>>, vector<16x32xbf16>
    %c0_3 = arith.constant 0 : index
    %c0_4 = arith.constant 0 : index
    %6 = vector.load %arg4[%c0_3, %c0_4] : memref<32x128xbf16, #tpu.memory_space<vmem>>, vector<32x128xbf16>
    %cst = arith.constant dense<0.000000e+00> : vector<16x128xf32>
    %7 = tpu.matmul %5, %6, %cst {dimension_numbers = #tpu.dot_dimension_numbers<[1], [0], [0], [1], [0, 0, 1, 1], [], []>} : vector<16x32xbf16>, vector<32x128xbf16>, vector<16x128xf32> -> vector<16x128xf32>
    %c0_5 = arith.constant 0 : index
    %c0_6 = arith.constant 0 : index
    %8 = vector.load %arg5[%c0_5, %c0_6] : memref<1x128xf32, #tpu.memory_space<vmem>>, vector<1x128xf32>
    %9 = vector.broadcast %8 : vector<1x128xf32> to vector<16x128xf32>
    %10 = arith.addf %7, %9 : vector<16x128xf32>
    %c0_i32_7 = arith.constant 0 : i32
    %11 = arith.cmpi eq, %arg1, %c0_i32_7 : i32
    %12 = arith.extui %11 : i1 to i32
    %c0_i32_8 = arith.constant 0 : i32
    %13 = arith.cmpi ne, %12, %c0_i32_8 : i32
    scf.if %13 {
      %c0_10 = arith.constant 0 : index
      %c0_11 = arith.constant 0 : index
      %17 = vector.load %arg7[%c0_10, %c0_11] : memref<16x1xf32, #tpu.memory_space<vmem>>, vector<16x1xf32>
      %cst_12 = arith.constant dense<0xFF800000> : vector<16xf32>
      %18 = vector.multi_reduction <maximumf>, %10, %cst_12 [1] : vector<16x128xf32> to vector<16xf32>
      %19 = vector.shape_cast %18 : vector<16xf32> to vector<16x1xf32>
      %20 = arith.maximumf %17, %19 : vector<16x1xf32>
      %c0_13 = arith.constant 0 : index
      %c0_14 = arith.constant 0 : index
      %21 = vector.load %arg8[%c0_13, %c0_14] : memref<16x1xf32, #tpu.memory_space<vmem>>, vector<16x1xf32>
      %22 = arith.subf %17, %20 : vector<16x1xf32>
      %23 = math.exp %22 : vector<16x1xf32>
      %24 = arith.mulf %21, %23 : vector<16x1xf32>
      %25 = vector.broadcast %20 : vector<16x1xf32> to vector<16x128xf32>
      %26 = arith.subf %10, %25 : vector<16x128xf32>
      %27 = math.exp %26 : vector<16x128xf32>
      %cst_15 = arith.constant dense<0.000000e+00> : vector<16xf32>
      %28 = vector.multi_reduction <add>, %27, %cst_15 [1] : vector<16x128xf32> to vector<16xf32>
      %29 = vector.shape_cast %28 : vector<16xf32> to vector<16x1xf32>
      %30 = arith.addf %24, %29 : vector<16x1xf32>
      %c0_16 = arith.constant 0 : index
      %c0_17 = arith.constant 0 : index
      %31 = vector.load %arg8[%c0_16, %c0_17] : memref<16x1xf32, #tpu.memory_space<vmem>>, vector<16x1xf32>
      tpu.vector_store %arg8[%c0_16, %c0_17], %30 {strides = array<i32>} : memref<16x1xf32, #tpu.memory_space<vmem>>, vector<16x1xf32>,
      %c0_18 = arith.constant 0 : index
      %c0_19 = arith.constant 0 : index
      %32 = vector.load %arg7[%c0_18, %c0_19] : memref<16x1xf32, #tpu.memory_space<vmem>>, vector<16x1xf32>
      tpu.vector_store %arg7[%c0_18, %c0_19], %20 {strides = array<i32>} : memref<16x1xf32, #tpu.memory_space<vmem>>, vector<16x1xf32>,
    } else {
    }
    %c1_i32 = arith.constant 1 : i32
    %14 = arith.cmpi eq, %arg1, %c1_i32 : i32
    %15 = arith.extui %14 : i1 to i32
    %c0_i32_9 = arith.constant 0 : i32
    %16 = arith.cmpi ne, %15, %c0_i32_9 : i32
    scf.if %16 {
      %c0_10 = arith.constant 0 : index
      %c0_11 = arith.constant 0 : index
      %17 = vector.load %arg7[%c0_10, %c0_11] : memref<16x1xf32, #tpu.memory_space<vmem>>, vector<16x1xf32>
      %c0_12 = arith.constant 0 : index
      %c0_13 = arith.constant 0 : index
      %18 = vector.load %arg8[%c0_12, %c0_13] : memref<16x1xf32, #tpu.memory_space<vmem>>, vector<16x1xf32>
      %19 = math.log %18 : vector<16x1xf32>
      %20 = arith.addf %17, %19 : vector<16x1xf32>
      %21 = vector.broadcast %20 : vector<16x1xf32> to vector<16x128xf32>
      %22 = arith.subf %10, %21 : vector<16x128xf32>
      %c0_14 = arith.constant 0 : index
      %c0_15 = arith.constant 0 : index
      %23 = vector.load %arg6[%c0_14, %c0_15] : memref<16x128xf32, #tpu.memory_space<vmem>>, vector<16x128xf32>
      tpu.vector_store %arg6[%c0_14, %c0_15], %22 {strides = array<i32>} : memref<16x128xf32, #tpu.memory_space<vmem>>, vector<16x128xf32>,
    } else {
    }
    return
  }
  func.func @transform_0(%arg0: i32, %arg1: i32, %arg2: i32) -> (i32, i32) {
    %c0_i32 = arith.constant 0 : i32
    %c0_i32_0 = arith.constant 0 : i32
    return %arg0, %c0_i32 : i32, i32
  }
  func.func @transform_1(%arg0: i32, %arg1: i32, %arg2: i32) -> (i32, i32) {
    %c0_i32 = arith.constant 0 : i32
    %c0_i32_0 = arith.constant 0 : i32
    return %c0_i32, %arg2 : i32, i32
  }
  func.func @transform_2(%arg0: i32, %arg1: i32, %arg2: i32) -> (i32, i32) {
    %c0_i32 = arith.constant 0 : i32
    %c0_i32_0 = arith.constant 0 : i32
    return %c0_i32, %arg2 : i32, i32
  }
  func.func @transform_3(%arg0: i32, %arg1: i32, %arg2: i32) -> (i32, i32) {
    %0 = arith.muli %arg1, %arg2 : i32
    %c0_i32 = arith.constant 0 : i32
    return %arg0, %0 : i32, i32
  }
}

</mosaic_0001>

<llo_original>
// kernel: tpu_custom_call.1
$region0: #{tpu_custom_call.1}
  #allocation0 [shape = 'u32[]', space=smem, size = 0x4, offset = 0x4, fixed_abs, tag = 'smem constant byte address 0x4 - core index']
  #allocation1 [shape = 'u32[72,128]{1,0:T(1,128)}', space=vmem, size = 0x9000, scoped, tag = 'internal scratch']
  #allocation2 [shape = 'f32[16,1]{1,0:T(8,128)}', space=vmem, size = 0x2000, scoped, tag = 'scratch operand']
  #allocation3 [shape = 'f32[16,1]{1,0:T(8,128)}', space=vmem, size = 0x2000, scoped, tag = 'scratch operand']
  %s0 = inlined_call_operand.hbm [shape: bf16[16,32], index: 0, kind: input, shape index: {}]
  %s1 = inlined_call_operand.hbm [shape: bf16[32,128], index: 1, kind: input, shape index: {}]
  %s2 = inlined_call_operand.vmem [shape: f32[1,128], index: 2, kind: input, shape index: {}]
  %s3 = inlined_call_operand.hbm [shape: f32[16,128], index: 3, kind: output, shape index: {}]
  %s4 = sld [smem:[#allocation0]]
  $region65: #{tpu_custom_call.1} parent=0
    _
  %s6 = ssub.s32 1, %s4
  %s7 = scalar_select 0, %s6, %s4
  $region1: #{tpu_custom_call.1} parent=0
    #allocation4 [shape = 'u8[4096]{0}', space=vmem, size = 0x1000, scoped, tag = 'input window, operand 0, single buffered']
    #allocation5 [shape = 's32[2]{0}', space=sflag, size = 0x8, scoped, tag = 'scoped memory for tpu_custom_call.1']
    #allocation6 [shape = 's32[2]{0}', space=sflag, size = 0x8, scoped, tag = 'scoped memory for tpu_custom_call.1']
    #allocation7 [shape = 'u8[8192]{0}', space=vmem, size = 0x2000, scoped, tag = 'input window, operand 1, single buffered']
    #allocation8 [shape = 's32[1]{0}', space=sflag, size = 0x4, scoped, tag = 'scoped memory for tpu_custom_call.1']
    #allocation9 [shape = 'u8[16384]{0}', space=vmem, size = 0x4000, scoped, tag = 'output window, operand 0']
    %8 = vsyncpa [#allocation5], 0
    %9 = vsyncpa [#allocation8], 0
    %10 = vsyncpa [#allocation6], 0
    %s11 = scalar_lea.sflag [#allocation6], 1
    %12 = vsyncpa %s11, 0
    loop: start=0, step=1, limit=4
    $region2: #{tpu_custom_call.1} parent=1 // loop_pre_header
      _
    $region3: #{tpu_custom_call.1} parent=1 // loop_header
      %s14 = sphi 0, %s18
      %p15 = scmp.ge.s32.totalorder %s14, 4
      %s21 = sphi 0, %s40
      %s22 = sphi 0, %s36
      %s23 = sphi 0, %s32
      %s24 = sphi 0, %s21
      %s25 = sphi 0, %s22
      %s26 = sphi 0, %s23
      %s27 = sphi 0, %s24
      %s28 = sphi 0, %s25
      %s29 = sphi 0, %s26
      %s43 = sphi 0, %s45
      %s46 = sphi 0, %s43
      %s47 = sphi 0, %s46
      %s63 = sphi 0, %s47
      %s69 = sphi 0, %s71
      %s72 = sphi 0, %s69
      %s73 = sphi 0, %s72
      %s89 = sphi 0, %s73
      %s95 = sphi 0, %s97
      %s98 = sphi 0, %s95
      %s99 = sphi 0, %s98
      %s115 = sphi 0, %s99
      %s125 = sphi 0, %s127
      %s128 = sphi 0, %s125
      %s129 = sphi 0, %s128
      %s145 = sphi 0, %s129
    $region4: #{tpu_custom_call.1} parent=1 // loop_header_branch
      %17 = sbr.rel (%p15) target = $region8
    $region5: #{tpu_custom_call.1} parent=1 // loop_body
      %s19 = ssub.s32 %s14, 1
      %s20 = ssub.s32 %s14, 2
      %s30 = sadd.s32 1, %s23
      %p31 = scmp.ge.s32.totalorder %s30, 1
      %s32 = scalar_select %p31, 0, %s30
      %s33 = sadd.s32 1, %s22
      %s34 = scalar_select %p31, %s33, %s22
      %p35 = scmp.ge.s32.totalorder %s34, 2
      %s36 = scalar_select %p35, 0, %s34
      %s37 = sadd.s32 1, %s21
      %s38 = scalar_select %p35, %s37, %s21
      %p39 = scmp.ge.s32.totalorder %s38, 1
      %s40 = scalar_select %p39, 0, %s38
      %s41 = ssub.s32 %s21, %s40
      %p42 = scmp.eq.s32.totalorder %s41, 0
      %s44 = sadd.s32 %s43, 1
      %s45 = scalar_select %p42, %s43, %s44
      %p48 = pneg %p42
      %p49 = scmp.eq.s32.totalorder %s14, 1
      %p50 = por %p48, %p49
      %p51 = scmp.ne.s32.totalorder %s43, %s46
      %p52 = scmp.eq.s32.totalorder %s14, 0
      %p53 = por %p51, %p52
      %p54 = scmp.ne.s32.totalorder %s43, %s46
      %p55 = scmp.eq.s32.totalorder %s19, 1
      %p56 = por %p54, %p55
      %p57 = scmp.ne.s32.totalorder %s46, %s47
      %p58 = scmp.eq.s32.totalorder %s19, 0
      %p59 = por %p57, %p58
      %p60 = scmp.ne.s32.totalorder %s46, %s47
      %p61 = scmp.eq.s32.totalorder %s20, 1
      %p62 = por %p60, %p61
      %p64 = scmp.ne.s32.totalorder %s47, %s63
      %p65 = scmp.eq.s32.totalorder %s20, 0
      %p66 = por %p64, %p65
      %s67 = ssub.s32 %s23, %s32
      %p68 = scmp.eq.s32.totalorder %s67, 0
      %s70 = sadd.s32 %s69, 1
      %s71 = scalar_select %p68, %s69, %s70
      %p74 = pneg %p68
      %p75 = scmp.eq.s32.totalorder %s14, 1
      %p76 = por %p74, %p75
      %p77 = scmp.ne.s32.totalorder %s69, %s72
      %p78 = scmp.eq.s32.totalorder %s14, 0
      %p79 = por %p77, %p78
      %p80 = scmp.ne.s32.totalorder %s69, %s72
      %p81 = scmp.eq.s32.totalorder %s19, 1
      %p82 = por %p80, %p81
      %p83 = scmp.ne.s32.totalorder %s72, %s73
      %p84 = scmp.eq.s32.totalorder %s19, 0
      %p85 = por %p83, %p84
      %p86 = scmp.ne.s32.totalorder %s72, %s73
      %p87 = scmp.eq.s32.totalorder %s20, 1
      %p88 = por %p86, %p87
      %p90 = scmp.ne.s32.totalorder %s73, %s89
      %p91 = scmp.eq.s32.totalorder %s20, 0
      %p92 = por %p90, %p91
      %s93 = ssub.s32 %s23, %s32
      %p94 = scmp.eq.s32.totalorder %s93, 0
      %s96 = sadd.s32 %s95, 1
      %s97 = scalar_select %p94, %s95, %s96
      %p100 = pneg %p94
      %p101 = scmp.eq.s32.totalorder %s14, 1
      %p102 = por %p100, %p101
      %p103 = scmp.ne.s32.totalorder %s95, %s98
      %p104 = scmp.eq.s32.totalorder %s14, 0
      %p105 = por %p103, %p104
      %p106 = scmp.ne.s32.totalorder %s95, %s98
      %p107 = scmp.eq.s32.totalorder %s19, 1
      %p108 = por %p106, %p107
      %p109 = scmp.ne.s32.totalorder %s98, %s99
      %p110 = scmp.eq.s32.totalorder %s19, 0
      %p111 = por %p109, %p110
      %p112 = scmp.ne.s32.totalorder %s98, %s99
      %p113 = scmp.eq.s32.totalorder %s20, 1
      %p114 = por %p112, %p113
      %p116 = scmp.ne.s32.totalorder %s99, %s115
      %p117 = scmp.eq.s32.totalorder %s20, 0
      %p118 = por %p116, %p117
      %s119 = smul.u32 %s22, %s23
      %s120 = smul.u32 %s36, %s32
      %s121 = ssub.s32 %s21, %s40
      %s122 = ssub.s32 %s119, %s120
      %s123 = sor.u32 %s121, %s122
      %p124 = scmp.eq.s32.totalorder %s123, 0
      %s126 = sadd.s32 %s125, 1
      %s127 = scalar_select %p124, %s125, %s126
      %p130 = pneg %p124
      %p131 = scmp.eq.s32.totalorder %s14, 1
      %p132 = por %p130, %p131
      %p133 = scmp.ne.s32.totalorder %s125, %s128
      %p134 = scmp.eq.s32.totalorder %s14, 0
      %p135 = por %p133, %p134
      %p136 = scmp.ne.s32.totalorder %s125, %s128
      %p137 = scmp.eq.s32.totalorder %s19, 1
      %p138 = por %p136, %p137
      %p139 = scmp.ne.s32.totalorder %s128, %s129
      %p140 = scmp.eq.s32.totalorder %s19, 0
      %p141 = por %p139, %p140
      %p142 = scmp.ne.s32.totalorder %s128, %s129
      %p143 = scmp.eq.s32.totalorder %s20, 1
      %p144 = por %p142, %p143
      %p146 = scmp.ne.s32.totalorder %s129, %s145
      %p147 = scmp.eq.s32.totalorder %s20, 0
      %p148 = por %p146, %p147
      %p149 = scmp.le.s32.totalorder 1, %s14
      %p150 = scmp.lt.s32.totalorder %s14, 3
      %p151 = pnand %p149, %p150
      %p152 = pneg %p151
      // Predicated region
      $region9: #{tpu_custom_call.1} parent=5 // pred_check
        _
      $region10: #{tpu_custom_call.1} parent=5 // pred_check_branch
        %154 = sbr.rel (%p151) target = $region12
      $region11: #{tpu_custom_call.1} parent=5 // pred_region
        %s155 = ssub.s32 %s14, 1
        // Predicated region
        $region13: #{tpu_custom_call.1} parent=11 // pred_check
          %p156 = pneg %p59
        $region14: #{tpu_custom_call.1} parent=11 // pred_check_branch
          %158 = sbr.rel (%p156) target = $region16
        $region15: #{tpu_custom_call.1} parent=11 // pred_region
          %s159 = smul.u32 2, %s24
          %161 = vsyncadd [#allocation5], 0
          %s162 = smul.addr %s159, 4
          %s163 = scalar_lea.hbm %s0, %s162
          %s164 = sshll.u32 %s163, 4
          %s165 = int_to_ptr.hbm [resolvable:$true] %s164
          %s166 = sshll.u32 [#allocation4], 4
          %s167 = int_to_ptr.vmem [resolvable:$true] %s166
          %172 = dma.hbm_to_vmem [thread:$0]  %s165, 128, %s167, [#allocation5], 64, 64, 4
        $region16: #{tpu_custom_call.1} parent=11 // pred_fallthru
          _
        // Predicated region
        $region17: #{tpu_custom_call.1} parent=11 // pred_check
          %p173 = pneg %p85
        $region18: #{tpu_custom_call.1} parent=11 // pred_check_branch
          %175 = sbr.rel (%p173) target = $region20
        $region19: #{tpu_custom_call.1} parent=11 // pred_region
          %177 = vsyncadd [#allocation8], 0
          %s178 = smul.addr %s26, 4
          %s179 = scalar_lea.hbm %s1, %s178
          %s180 = sshll.u32 %s179, 4
          %s181 = int_to_ptr.hbm [resolvable:$true] %s180
          %s182 = sshll.u32 [#allocation7], 4
          %s183 = int_to_ptr.vmem [resolvable:$true] %s182
          %188 = dma.hbm_to_vmem [thread:$0]  %s181, 256, %s183, [#allocation8], 64, 64, 4
        $region20: #{tpu_custom_call.1} parent=11 // pred_fallthru
          _
        // Predicated region
        $region21: #{tpu_custom_call.1} parent=11 // pred_check
          %p189 = pneg %p111
        $region22: #{tpu_custom_call.1} parent=11 // pred_check_branch
          %191 = sbr.rel (%p189) target = $region24
        $region23: #{tpu_custom_call.1} parent=11 // pred_region
          %p192 = scmp.lt.s32.totalorder %s26, 0
          %s193 = scalar_select %p192, %s26, 0
          %s194 = scalar_lea.vmem %s2, %s193
        $region24: #{tpu_custom_call.1} parent=11 // pred_fallthru
          _
      $region12: #{tpu_custom_call.1} parent=5 // pred_fallthru
        _
      %p195 = scmp.lt.s32.totalorder %s14, 2
      // Predicated region
      $region25: #{tpu_custom_call.1} parent=5 // pred_check
        %p196 = pneg %p195
      $region26: #{tpu_custom_call.1} parent=5 // pred_check_branch
        %198 = sbr.rel (%p196) target = $region28
      $region27: #{tpu_custom_call.1} parent=5 // pred_region
        _
      $region28: #{tpu_custom_call.1} parent=5 // pred_fallthru
        _
      %p199 = scmp.le.s32.totalorder 1, %s14
      %p200 = scmp.lt.s32.totalorder %s14, 3
      %p201 = pnand %p199, %p200
      %p202 = pneg %p201
      // Predicated region
      $region29: #{tpu_custom_call.1} parent=5 // pred_check
        _
      $region30: #{tpu_custom_call.1} parent=5 // pred_check_branch
        %204 = sbr.rel (%p201) target = $region32
      $region31: #{tpu_custom_call.1} parent=5 // pred_region
        %s205 = ssub.s32 %s14, 1
        // Predicated region
        $region33: #{tpu_custom_call.1} parent=31 // pred_check
          %p206 = pneg %p59
        $region34: #{tpu_custom_call.1} parent=31 // pred_check_branch
          %208 = sbr.rel (%p206) target = $region36
        $region35: #{tpu_custom_call.1} parent=31 // pred_region
          %210 = dma.done [#allocation5], 128
        $region36: #{tpu_custom_call.1} parent=31 // pred_fallthru
          _
        // Predicated region
        $region37: #{tpu_custom_call.1} parent=31 // pred_check
          %p211 = pneg %p85
        $region38: #{tpu_custom_call.1} parent=31 // pred_check_branch
          %213 = sbr.rel (%p211) target = $region40
        $region39: #{tpu_custom_call.1} parent=31 // pred_region
          %215 = dma.done [#allocation8], 256
        $region40: #{tpu_custom_call.1} parent=31 // pred_fallthru
          _
        %p216 = pneg %p59
        %p217 = pneg %p56
        %p218 = pneg %p85
        %p219 = pneg %p82
        %p220 = scmp.lt.s32.totalorder %s26, 0
        %s221 = scalar_select %p220, %s26, 0
        %s222 = scalar_lea.vmem %s2, %s221
        %p223 = pneg %p111
        %p224 = pneg %p108
        %p225 = pneg %p141
        %p226 = pneg %p138
        %s227 = sand.u32 %s128, 1
        %s228 = scalar_lea.sflag [#allocation6], %s227
        %s229 = sand.u32 %s128, 1
        %s230 = smul.addr %s229, 16
        %s231 = scalar_lea.vmem [#allocation9], %s230
        %s232 = smul.u32 2, %s24
        %p233 = scmp.lt.s32.totalorder %s26, 0
        %s234 = scalar_select %p233, %s26, 0
        %s235 = scalar_lea.vmem %s2, %s234
        %s236 = smul.u32 %s25, %s26
        %s237 = smul.u32 2, %s24
        %p239 = scmp.eq.s32.totalorder %s25, 0
        %p240 = scmp.eq.s32.totalorder %s26, 0
        %p241 = pnand %p239, %p240
        %p242 = pneg %p241
        // Predicated region
        $region41: #{tpu_custom_call.1} parent=31 // pred_check
          _
        $region42: #{tpu_custom_call.1} parent=31 // pred_check_branch
          %244 = sbr.rel (%p241) target = $region44
        $region43: #{tpu_custom_call.1} parent=31 // pred_region
          %vm245 = vcmask 7168
          %246 = vst.msk [vmem:[#allocation2] sm:$0xff] %vm245, -inf
          %247 = vst.msk [vmem:[#allocation2 + $0x8] sm:$0xff] %vm245, -inf
          %248 = vst.msk [vmem:[#allocation3] sm:$0xff] %vm245, 0.0
          %249 = vst.msk [vmem:[#allocation3 + $0x8] sm:$0xff] %vm245, 0.0
        $region44: #{tpu_custom_call.1} parent=31 // pred_fallthru
          _
        %v250 = vld [vmem:[#allocation4] sm:$0xf]
        %v251 = vld [vmem:[#allocation4 + $0x4] sm:$0xf]
        %v252 = vld [vmem:[#allocation7] sm:$0xf]
        %v253 = vld [vmem:[#allocation7 + $0x4] sm:$0xf]
        %v254 = vld [vmem:[#allocation7 + $0x8] sm:$0xf]
        %v255 = vld [vmem:[#allocation7 + $0xc] sm:$0xf]
        %v256 = vld [vmem:[%s235] sm:$0x1]
        %v258 = vperm.slane %v256, 0
        %v262 = vunpack.c.l.b16 %v250
        %v263 = vunpack.c.l.b16 %v251
        %v264 = vpack.c.b16 %v263, %v262
        %v269 = vunpack.c.l.b16 %v252
        %v270 = vunpack.c.l.b16 %v253
        %v271 = vunpack.c.l.b16 %v254
        %v272 = vunpack.c.l.b16 %v255
        %v273 = vpack.c.b16 %v270, %v269
        %v274 = vpack.c.b16 %v272, %v271
        %vm277 = vcmask 261120
        %v279 = vsel %vm277, %v264, 0
        %281 = vmatpush.bf16.msra.mxu0 0
        %282 = vmatpush.bf16.msra.mxu0 0
        %283 = vmatpush.bf16.msra.mxu0 0
        %284 = vmatpush.bf16.msra.mxu0 0
        %285 = vmatpush.bf16.msra.mxu0 0
        %286 = vmatpush.bf16.msra.mxu0 0
        %287 = vmatpush.bf16.msra.mxu0 %v274
        %288 = vmatpush.bf16.msra.mxu0 %v273
        %289 = vmatmul.bf16.gmra.mxu0 %v279
        %v290 = vpop.f32.mrf.mxu0
        %v291 = vadd.f32 %v258, %v290
        %v292 = vpop.f32.mrf.mxu0
        %v293 = vadd.f32 %v258, %v292
        %294 = vdwg.mxu0
        // Predicated region
        $region45: #{tpu_custom_call.1} parent=31 // pred_check
          %p295 = pneg %p239
        $region46: #{tpu_custom_call.1} parent=31 // pred_check_branch
          %297 = sbr.rel (%p295) target = $region48
        $region47: #{tpu_custom_call.1} parent=31 // pred_region
          %v298 = vld [vmem:[#allocation2] sm:$0xff]
          %v299 = vld [vmem:[#allocation2 + $0x8] sm:$0xff]
          %300 = vmax.xlane.f32.xlu0 %v291
          %v301 = vpop.xlane.xlu0 %300
          %302 = vmax.xlane.f32.xlu0 %v293
          %v303 = vpop.xlane.xlu0 %302
          %v304 = vmax.f32 %v298, %v301
          %v305 = vmax.f32 %v299, %v303
          %v306 = vld [vmem:[#allocation3] sm:$0xff]
          %v307 = vld [vmem:[#allocation3 + $0x8] sm:$0xff]
          %v308 = vsub.f32 %v298, %v304
          %v309 = vsub.f32 %v299, %v305
          %v310 = vmul.f32 %v308, 1.442695
          %v311 = vpow.pop %v310
          %v312 = vmul.f32 %v309, 1.442695
          %v313 = vpow.pop %v312
          %v314 = vmul.f32 %v306, %v311
          %v315 = vmul.f32 %v307, %v313
          %317 = vset.pattern.permute.xlu0 0
          %318 = vperm.xlu0 %317, %v304
          %v319 = vpop.permute.xlu0 %318
          %322 = vset.pattern.permute.xlu0 0
          %323 = vperm.xlu0 %322, %v305
          %v324 = vpop.permute.xlu0 %323
          %v326 = vsub.f32 %v291, %v319
          %v327 = vsub.f32 %v293, %v324
          %v328 = vmul.f32 %v326, 1.442695
          %v329 = vpow.pop %v328
          %v330 = vmul.f32 %v327, 1.442695
          %v331 = vpow.pop %v330
          %332 = vadd.xlane.f32.xlu0 %v329
          %v333 = vpop.xlane.xlu0 %332
          %334 = vadd.xlane.f32.xlu0 %v331
          %v335 = vpop.xlane.xlu0 %334
          %v336 = vadd.f32 %v314, %v333
          %v337 = vadd.f32 %v315, %v335
          %vm338 = vcmask 7168
          %339 = vst.msk [vmem:[#allocation3] sm:$0xff] %vm338, %v336
          %340 = vst.msk [vmem:[#allocation3 + $0x8] sm:$0xff] %vm338, %v337
          %341 = vst.msk [vmem:[#allocation2] sm:$0xff] %vm338, %v304
          %342 = vst.msk [vmem:[#allocation2 + $0x8] sm:$0xff] %vm338, %v305
        $region48: #{tpu_custom_call.1} parent=31 // pred_fallthru
          _
        %p343 = scmp.eq.s32.totalorder %s25, 1
        // Predicated region
        $region49: #{tpu_custom_call.1} parent=31 // pred_check
          %p344 = pneg %p343
        $region50: #{tpu_custom_call.1} parent=31 // pred_check_branch
          %346 = sbr.rel (%p344) target = $region52
        $region51: #{tpu_custom_call.1} parent=31 // pred_region
          %v347 = vld [vmem:[#allocation2] sm:$0xff]
          %v348 = vld [vmem:[#allocation2 + $0x8] sm:$0xff]
          %v349 = vld [vmem:[#allocation3] sm:$0xff]
          %v350 = vld [vmem:[#allocation3 + $0x8] sm:$0xff]
          %v351 = vlog2.pop %v349
          %v352 = vmul.f32 %v351, 0.6931472
          %v353 = vlog2.pop %v350
          %v354 = vmul.f32 %v353, 0.6931472
          %v355 = vadd.f32 %v347, %v352
          %v356 = vadd.f32 %v348, %v354
          %358 = vset.pattern.permute.xlu0 0
          %359 = vperm.xlu0 %358, %v355
          %v360 = vpop.permute.xlu0 %359
          %363 = vset.pattern.permute.xlu0 0
          %364 = vperm.xlu0 %363, %v356
          %v365 = vpop.permute.xlu0 %364
          %v367 = vsub.f32 %v291, %v360
          %v368 = vsub.f32 %v293, %v365
          %369 = vst [vmem:[%s231] sm:$0xff] %v367
          %370 = vst [vmem:[%s231 + $0x8] sm:$0xff] %v368
        $region52: #{tpu_custom_call.1} parent=31 // pred_fallthru
          _
        %s371 = sand.u32 %s128, 1
        %s372 = scalar_lea.sflag [#allocation6], %s371
        %s373 = sand.u32 %s128, 1
        %s374 = smul.addr %s373, 16
        %s375 = scalar_lea.vmem [#allocation9], %s374
        // Predicated region
        $region53: #{tpu_custom_call.1} parent=31 // pred_check
          %p376 = pneg %p138
        $region54: #{tpu_custom_call.1} parent=31 // pred_check_branch
          %378 = sbr.rel (%p376) target = $region56
        $region55: #{tpu_custom_call.1} parent=31 // pred_region
          %s379 = smul.u32 %s25, %s26
          %s380 = smul.u32 2, %s24
          %382 = vsyncadd %s372, 0
          %s383 = sadd.s32 %s379, %s380
          %s384 = smul.addr %s383, 8
          %s385 = scalar_lea.hbm %s3, %s384
          %s386 = sshll.u32 %s375, 4
          %s387 = int_to_ptr.vmem [resolvable:$true] %s386
          %s388 = sshll.u32 %s385, 4
          %s389 = int_to_ptr.hbm [resolvable:$true] %s388
          %394 = dma.vmem_to_hbm [thread:$0]  %s387, 256, %s389, %s372, 128, 128, 8
        $region56: #{tpu_custom_call.1} parent=31 // pred_fallthru
          _
      $region32: #{tpu_custom_call.1} parent=5 // pred_fallthru
        _
      %p395 = scmp.le.s32.totalorder 2, %s14
      // Predicated region
      $region57: #{tpu_custom_call.1} parent=5 // pred_check
        %p396 = pneg %p395
      $region58: #{tpu_custom_call.1} parent=5 // pred_check_branch
        %398 = sbr.rel (%p396) target = $region60
      $region59: #{tpu_custom_call.1} parent=5 // pred_region
        %s399 = ssub.s32 %s14, 2
        // Predicated region
        $region61: #{tpu_custom_call.1} parent=59 // pred_check
          %p400 = pneg %p144
        $region62: #{tpu_custom_call.1} parent=59 // pred_check_branch
          %402 = sbr.rel (%p400) target = $region64
        $region63: #{tpu_custom_call.1} parent=59 // pred_region
          %s403 = sand.u32 %s129, 1
          %s404 = scalar_lea.sflag [#allocation6], %s403
          %s405 = sand.u32 %s129, 1
          %s406 = smul.addr %s405, 16
          %s407 = scalar_lea.vmem [#allocation9], %s406
          %409 = dma.done %s404, 256
        $region64: #{tpu_custom_call.1} parent=59 // pred_fallthru
          _
      $region60: #{tpu_custom_call.1} parent=5 // pred_fallthru
        _
    $region6: #{tpu_custom_call.1} parent=1 // loop_footer
      %s18 = sadd.s32 1, %s14
    $region7: #{tpu_custom_call.1} parent=1 // loop_footer_branch
      %13 = sbr.rel target = $region3
    $region8: #{tpu_custom_call.1} parent=1 // loop_exit
      _
    %410 = vsyncpa [#allocation5], 1
    %s411 = scalar_lea.sflag [#allocation5], 1
    %412 = vsyncpa %s411, 1
    %413 = vsyncpa [#allocation8], 1
    %414 = vsyncpa [#allocation6], 1
    %s415 = scalar_lea.sflag [#allocation6], 1
    %416 = vsyncpa %s415, 1

</llo_original>
